<compile_context>
chip_gen: v6e
topology: v6e:2x2x1
jax: 0.10.0
libtpu: 0.0.40
codegen_flags: <defaults>
</compile_context>

<pallas_src>
import functools

import jax
import jax.numpy as jnp
from jax.experimental import pallas as pl
from jax.experimental.pallas import tpu as pltpu

_LANES = 128
_SUBLANES = 8
_CHUNK_ROWS = 1024  # inner-loop sub-chunk: 512 KiB of f32 intermediates per array


def _round_up(x, m):
    return ((x + m - 1) // m) * m


def _cdiv(a, b):
    return -(-a // b)


def _tpu_config():
    """Per-generation (tile_bytes_per_input, vmem_limit_bytes, n_splits)."""
    kind = ""
    try:
        kind = (jax.devices()[0].device_kind or "").lower()
    except Exception:
        pass
    if "v2" in kind or "v3" in kind:
        # Old small-VMEM parts: modest tiles, default VMEM limit, 1 core/device.
        return (1 << 20), None, 1
    if "v5p" in kind or "v4" in kind:
        # Megacore (2 TensorCores, 128 MiB VMEM): big tiles + 2-way split.
        return (8 << 20), (64 << 20), 2
    if "v6" in kind or "v5" in kind:
        # v5e / v6e: 128 MiB VMEM, single TensorCore -> no split, 8 MiB tiles.
        return (8 << 20), (64 << 20), 1
    # v7x (64 MiB VMEM, 2 TensorCores) and unknown/future parts:
    # conservative VMEM budget, 2-way "parallel" split.
    return (4 << 20), (48 << 20), 2


def _l2_kernel(inp_ref, gt_ref, out_ref, *, block_rows, chunk_rows,
               blocks_per_split, n_blocks, total_rows, needs_mask):
    j = pl.program_id(0)   # split index ("parallel")
    k = pl.program_id(1)   # block index within the split (reduction axis)

    # The output block index is constant over k, so out_ref stays VMEM-resident
    # across the whole split and doubles as the accumulator.
    @pl.when(k == 0)
    def _():
        out_ref[...] = jnp.zeros_like(out_ref)

    n_chunks = block_rows // chunk_rows

    def chunk_body(c, masked):
        base = c * chunk_rows
        if not isinstance(base, int):
            base = pl.multiple_of(base, chunk_rows)
        a = inp_ref[pl.ds(base, chunk_rows), :].astype(jnp.float32)
        b = gt_ref[pl.ds(base, chunk_rows), :].astype(jnp.float32)
        d = a - b
        sq = d * d
        if masked:
            # Zero rows past the true data (partial last block: Pallas reads
            # undefined data past the array end; the select discards it even
            # if it is NaN/Inf).
            blk = j * blocks_per_split + k          # unclamped logical block
            row_ids = (blk * block_rows + base
                       + jax.lax.broadcasted_iota(jnp.int32, sq.shape, 0))
            sq = jnp.where(row_ids < total_rows, sq, 0.0)
        # Partial-reduce the (chunk_rows, 128) chunk into the (8, 128) vreg
        # accumulator: pure VPU adds, no cross-lane reduce in the hot loop.
        out_ref[...] += sq.reshape(
            chunk_rows // _SUBLANES, _SUBLANES, _LANES).sum(axis=0)

    def accumulate(masked):
        if n_chunks == 1:
            chunk_body(0, masked)
        else:
            def body(c, carry):
                chunk_body(c, masked)
                return carry
            jax.lax.fori_loop(0, n_chunks, body, 0, unroll=n_chunks <= 8)

    if needs_mask:
        blk = j * blocks_per_split + k              # unclamped logical block
        # Hot loop stays mask-free; only the last real block pays the mask.
        @pl.when(blk < n_blocks - 1)
        def _():
            accumulate(masked=False)

        @pl.when(blk == n_blocks - 1)
        def _():
            accumulate(masked=True)
        # blk >= n_blocks: fully-clamped duplicate block -> skip compute.
    else:
        accumulate(masked=False)


def l2_loss(inp, gt, weight=1.0, *, block_rows=None, n_splits=None):
    """MSE(inp, gt) * weight (mean over all elements), computed on TPU."""
    assert inp.shape == gt.shape, "L2 requires matching shapes"
    n_elems = int(inp.size)
    if n_elems == 0:
        return jnp.float32(0.0)

    tile_bytes, vmem_limit, cfg_splits = _tpu_config()
    if n_splits is None:
        n_splits = cfg_splits

    flat_i = inp.reshape(-1)
    flat_g = gt.reshape(-1)

    # Pad ONLY when n_elems is not a multiple of 128 (and then <128 zeros).
    # Zero padding on BOTH inputs contributes exactly 0 to the squared error.
    pad = (-n_elems) % _LANES
    if pad:
        flat_i = jnp.pad(flat_i, (0, pad))
        flat_g = jnp.pad(flat_g, (0, pad))
    rows = (n_elems + pad) // _LANES

    x2d = flat_i.reshape(rows, _LANES)   # free bitcast-style reshape
    g2d = flat_g.reshape(rows, _LANES)

    # Dtype-aware sublane packing: 8 rows (f32), 16 (bf16/f16), 32 (int8/fp8).
    itemsizes = (jnp.dtype(inp.dtype).itemsize, jnp.dtype(gt.dtype).itemsize)
    max_itemsize = max(itemsizes)
    min_itemsize = min(itemsizes)
    pack = _SUBLANES * max(1, 4 // min_itemsize)

    # Tile sizing by byte budget (native dtype), pack-aligned, clamped to data.
    if block_rows is None:
        block_rows = tile_bytes // (_LANES * max_itemsize)
    block_rows = max(int(block_rows), pack)
    block_rows -= block_rows % pack
    block_rows = min(block_rows, _round_up(rows, pack))

    chunk_rows = min(_CHUNK_ROWS, block_rows)
    chunk_rows -= chunk_rows % pack
    chunk_rows = max(chunk_rows, pack)
    block_rows = _round_up(block_rows, chunk_rows)   # chunk divides block

    n_blocks = _cdiv(rows, block_rows)
    n_splits = max(1, min(int(n_splits), n_blocks))
    blocks_per_split = _cdiv(n_blocks, n_splits)

    needs_clamp = n_splits * blocks_per_split > n_blocks
    needs_mask = (n_blocks * block_rows != rows) or needs_clamp

    if needs_clamp:
        def in_map(j, k):
            return (jnp.minimum(j * blocks_per_split + k, n_blocks - 1), 0)
    else:
        def in_map(j, k):
            return (j * blocks_per_split + k, 0)

    kernel = functools.partial(
        _l2_kernel,
        block_rows=block_rows,
        chunk_rows=chunk_rows,
        blocks_per_split=blocks_per_split,
        n_blocks=n_blocks,
        total_rows=rows,
        needs_mask=needs_mask,
    )

    compiler_kwargs = dict(dimension_semantics=("parallel", "arbitrary"))
    if vmem_limit is not None:
        # 2 inputs x 2 pipeline buffers + chunk-sized f32 intermediates.
        needed = 4 * block_rows * _LANES * max_itemsize + (8 << 20)
        compiler_kwargs["vmem_limit_bytes"] = int(max(vmem_limit, needed))

    partials = pl.pallas_call(
        kernel,
        out_shape=jax.ShapeDtypeStruct((n_splits * _SUBLANES, _LANES),
                                       jnp.float32),
        grid_spec=pltpu.PrefetchScalarGridSpec(
            num_scalar_prefetch=0,
            grid=(n_splits, blocks_per_split),
            in_specs=[
                pl.BlockSpec((block_rows, _LANES), in_map),
                pl.BlockSpec((block_rows, _LANES), in_map),
            ],
            out_specs=pl.BlockSpec((_SUBLANES, _LANES), lambda j, k: (j, 0)),
        ),
        compiler_params=pltpu.CompilerParams(**compiler_kwargs),
    )(x2d, g2d)

    # Single cross-lane reduce + mean/weight scaling, once, outside the kernel.
    return jnp.sum(partials) * (float(weight) / float(n_elems))


class L2:
    """JAX/Pallas port of the PyTorch L2 module (MSELoss * weight)."""

    def __init__(self, weight=1.0, name="L2_img", metric=False):
        self.name = f"{name}_loss" if not metric else f"{name}_metric"
        self.weight = weight

    def __call__(self, inp, gt):
        return l2_loss(inp, gt, weight=self.weight)


if __name__ == "__main__":
    key = jax.random.PRNGKey(0)
    k1, k2, k3, k4, k5, k6 = jax.random.split(key, 6)

    def ref_l2(a, b, w=1.0):
        return jnp.mean((a.astype(jnp.float32) - b.astype(jnp.float32)) ** 2) * w

    # 1) Primary check: NCHW f32, lane-aligned, unmasked fast path.
    inp = jax.random.normal(k1, (2, 4, 16, 16), dtype=jnp.float32)
    gt = jax.random.normal(k2, (2, 4, 16, 16), dtype=jnp.float32)
    module = L2(weight=1.0)
    out = jax.block_until_ready(module(inp, gt))
    assert jnp.allclose(out, ref_l2(inp, gt), rtol=1e-5, atol=1e-6), out

    # 2) Ragged element count: <128-elem pad + masked partial last block.
    inp2 = jax.random.normal(k3, (1, 3, 50, 41), dtype=jnp.float32)
    gt2 = jax.random.normal(k4, (1, 3, 50, 41), dtype=jnp.float32)
    out2 = jax.block_until_ready(l2_loss(inp2, gt2, weight=0.5))
    assert jnp.allclose(out2, ref_l2(inp2, gt2, 0.5), rtol=1e-5, atol=1e-6), out2

    # 3) bf16 inputs: exercises the 16-row packed-sublane alignment.
    inp3 = jax.random.normal(k5, (2, 4, 16, 16), dtype=jnp.bfloat16)
    gt3 = jax.random.normal(k6, (2, 4, 16, 16), dtype=jnp.bfloat16)
    out3 = jax.block_until_ready(l2_loss(inp3, gt3))
    assert jnp.allclose(out3, ref_l2(inp3, gt3), rtol=1e-4, atol=1e-5), out3

    # 4) Small-block override: multi-block grid, 2-way split with clamped
    #    duplicate blocks (compute skipped) on the second split.
    inp4 = jax.random.normal(k1, (24, 128), dtype=jnp.float32)
    gt4 = jax.random.normal(k2, (24, 128), dtype=jnp.float32)
    out4 = jax.block_until_ready(l2_loss(inp4, gt4, block_rows=8, n_splits=2))
    assert jnp.allclose(out4, ref_l2(inp4, gt4), rtol=1e-5, atol=1e-6), out4

    # 5) Multi-block + 2-way split with a genuinely partial (row-masked)
    #    final block — locks in the OOB-read-then-mask behavior.
    inp5 = jax.random.normal(k3, (50, 128), dtype=jnp.float32)
    gt5 = jax.random.normal(k4, (50, 128), dtype=jnp.float32)
    out5 = jax.block_until_ready(l2_loss(inp5, gt5, block_rows=16, n_splits=2))
    assert jnp.allclose(out5, ref_l2(inp5, gt5), rtol=1e-5, atol=1e-6), out5

    print("KERNEL_OK")
</pallas_src>

<mosaic_0001>
module attributes {stable_mosaic.version = 11 : i64} {
  func.func @_l2_kernel(%arg0: i32, %arg1: i32, %arg2: memref<16x128xf32, #tpu.memory_space<vmem>>, %arg3: memref<16x128xf32, #tpu.memory_space<vmem>>, %arg4: memref<8x128xf32, #tpu.memory_space<vmem>>) attributes {dimension_semantics = [#tpu.dimension_semantics<parallel>, #tpu.dimension_semantics<arbitrary>], iteration_bounds = array<i64: 1, 1>, scalar_prefetch = 0 : i64, scratch_operands = 0 : i64, tpu.core_type = #tpu.core_type<tc>, window_params = [{transform_indices = @transform_0, window_bounds = array<i64: 16, 128>}, {transform_indices = @transform_1, window_bounds = array<i64: 16, 128>}, {transform_indices = @transform_2, window_bounds = array<i64: 8, 128>}]} {
    %c0_i32 = arith.constant 0 : i32
    %0 = arith.cmpi eq, %arg1, %c0_i32 : i32
    %1 = arith.extui %0 : i1 to i32
    %c0_i32_0 = arith.constant 0 : i32
    %2 = arith.cmpi ne, %1, %c0_i32_0 : i32
    scf.if %2 {
      %cst_8 = arith.constant 0.000000e+00 : f32
      %12 = vector.broadcast %cst_8 : f32 to vector<8x128xf32>
      %c0_9 = arith.constant 0 : index
      %c0_10 = arith.constant 0 : index
      %13 = vector.load %arg4[%c0_9, %c0_10] : memref<8x128xf32, #tpu.memory_space<vmem>>, vector<8x128xf32>
      tpu.vector_store %arg4[%c0_9, %c0_10], %12 {strides = array<i32>} : memref<8x128xf32, #tpu.memory_space<vmem>>, vector<8x128xf32>,
    } else {
    }
    %c0 = arith.constant 0 : index
    %c0_1 = arith.constant 0 : index
    %3 = vector.load %arg2[%c0, %c0_1] : memref<16x128xf32, #tpu.memory_space<vmem>>, vector<16x128xf32>
    %c0_2 = arith.constant 0 : index
    %c0_3 = arith.constant 0 : index
    %4 = vector.load %arg3[%c0_2, %c0_3] : memref<16x128xf32, #tpu.memory_space<vmem>>, vector<16x128xf32>
    %5 = arith.subf %3, %4 : vector<16x128xf32>
    %6 = arith.mulf %5, %5 : vector<16x128xf32>
    %c0_4 = arith.constant 0 : index
    %c0_5 = arith.constant 0 : index
    %7 = vector.load %arg4[%c0_4, %c0_5] : memref<8x128xf32, #tpu.memory_space<vmem>>, vector<8x128xf32>
    %8 = vector.shape_cast %6 : vector<16x128xf32> to vector<2x8x128xf32>
    %cst = arith.constant dense<0.000000e+00> : vector<8x128xf32>
    %9 = vector.multi_reduction <add>, %8, %cst [0] : vector<2x8x128xf32> to vector<8x128xf32>
    %10 = arith.addf %7, %9 : vector<8x128xf32>
    %c0_6 = arith.constant 0 : index
    %c0_7 = arith.constant 0 : index
    %11 = vector.load %arg4[%c0_6, %c0_7] : memref<8x128xf32, #tpu.memory_space<vmem>>, vector<8x128xf32>
    tpu.vector_store %arg4[%c0_6, %c0_7], %10 {strides = array<i32>} : memref<8x128xf32, #tpu.memory_space<vmem>>, vector<8x128xf32>,
    return
  }
  func.func @transform_0(%arg0: i32, %arg1: i32) -> (i32, i32) {
    %c1_i32 = arith.constant 1 : i32
    %0 = arith.muli %arg0, %c1_i32 : i32
    %1 = arith.addi %0, %arg1 : i32
    %c0_i32 = arith.constant 0 : i32
    %c0_i32_0 = arith.constant 0 : i32
    return %1, %c0_i32 : i32, i32
  }
  func.func @transform_1(%arg0: i32, %arg1: i32) -> (i32, i32) {
    %c1_i32 = arith.constant 1 : i32
    %0 = arith.muli %arg0, %c1_i32 : i32
    %1 = arith.addi %0, %arg1 : i32
    %c0_i32 = arith.constant 0 : i32
    %c0_i32_0 = arith.constant 0 : i32
    return %1, %c0_i32 : i32, i32
  }
  func.func @transform_2(%arg0: i32, %arg1: i32) -> (i32, i32) {
    %c0_i32 = arith.constant 0 : i32
    %c0_i32_0 = arith.constant 0 : i32
    return %arg0, %c0_i32 : i32, i32
  }
}

</mosaic_0001>

<llo_original>
// kernel: tpu_custom_call.1
$region0: #{tpu_custom_call.1}
  #allocation0 [shape = 'u32[]', space=smem, size = 0x4, offset = 0x4, fixed_abs, tag = 'smem constant byte address 0x4 - core index']
  #allocation1 [shape = 'u32[144,128]{1,0:T(1,128)}', space=vmem, size = 0x12000, scoped, tag = 'internal scratch']
  %s0 = inlined_call_operand.hbm [shape: f32[16,128], index: 0, kind: input, shape index: {}]
  %s1 = inlined_call_operand.hbm [shape: f32[16,128], index: 1, kind: input, shape index: {}]
  %s2 = inlined_call_operand.hbm [shape: f32[8,128], index: 2, kind: output, shape index: {}]
  %s3 = sld [smem:[#allocation0]]
  $region30: #{tpu_custom_call.1} parent=0
    _
  %s5 = ssub.s32 1, %s3
  %s6 = scalar_select 0, %s5, %s3
  $region1: #{tpu_custom_call.1} parent=0
    #allocation2 [shape = 'u8[8192]{0}', space=vmem, size = 0x2000, scoped, tag = 'input window, operand 0, single buffered']
    #allocation3 [shape = 's32[1]{0}', space=sflag, size = 0x4, scoped, tag = 'scoped memory for tpu_custom_call.1']
    #allocation4 [shape = 's32[1]{0}', space=sflag, size = 0x4, scoped, tag = 'scoped memory for tpu_custom_call.1']
    #allocation5 [shape = 'u8[8192]{0}', space=vmem, size = 0x2000, scoped, tag = 'input window, operand 1, single buffered']
    #allocation6 [shape = 's32[1]{0}', space=sflag, size = 0x4, scoped, tag = 'scoped memory for tpu_custom_call.1']
    #allocation7 [shape = 'u8[4096]{0}', space=vmem, size = 0x1000, scoped, tag = 'output window, operand 0, single buffered']
    %7 = vsyncpa [#allocation3], 0
    %8 = vsyncpa [#allocation6], 0
    %9 = vsyncpa [#allocation4], 0
    // Predicated region
    $region2: #{tpu_custom_call.1} parent=1 // pred_check
      _
    $region3: #{tpu_custom_call.1} parent=1 // pred_check_branch
      %11 = sbr.rel (0) target = $region5
    $region4: #{tpu_custom_call.1} parent=1 // pred_region
      %s12 = sadd.s32 0, 0
      %s13 = smul.u32 2, %s12
      %s15 = ssub.s32 256, 256
      %16 = vsyncadd [#allocation3], %s15
      %s17 = smul.addr %s13, 128
      %s18 = scalar_lea.hbm %s0, %s17
      %s19 = sshll.u32 [#allocation2], 4
      %s20 = int_to_ptr.vmem [resolvable:$true] %s19
      %25 = dma.hbm_to_vmem [thread:$0]  %s18, 256, %s20, [#allocation3], 128, 128, 8
    $region5: #{tpu_custom_call.1} parent=1 // pred_fallthru
      _
    // Predicated region
    $region6: #{tpu_custom_call.1} parent=1 // pred_check
      _
    $region7: #{tpu_custom_call.1} parent=1 // pred_check_branch
      %27 = sbr.rel (0) target = $region9
    $region8: #{tpu_custom_call.1} parent=1 // pred_region
      %s28 = sadd.s32 0, 0
      %s29 = smul.u32 2, %s28
      %s31 = ssub.s32 256, 256
      %32 = vsyncadd [#allocation6], %s31
      %s33 = smul.addr %s29, 128
      %s34 = scalar_lea.hbm %s1, %s33
      %s35 = sshll.u32 [#allocation5], 4
      %s36 = int_to_ptr.vmem [resolvable:$true] %s35
      %41 = dma.hbm_to_vmem [thread:$0]  %s34, 256, %s36, [#allocation6], 128, 128, 8
    $region9: #{tpu_custom_call.1} parent=1 // pred_fallthru
      _
    // Predicated region
    $region10: #{tpu_custom_call.1} parent=1 // pred_check
      _
    $region11: #{tpu_custom_call.1} parent=1 // pred_check_branch
      %43 = sbr.rel (0) target = $region13
    $region12: #{tpu_custom_call.1} parent=1 // pred_region
      %44 = dma.done [#allocation3], 256
    $region13: #{tpu_custom_call.1} parent=1 // pred_fallthru
      _
    // Predicated region
    $region14: #{tpu_custom_call.1} parent=1 // pred_check
      _
    $region15: #{tpu_custom_call.1} parent=1 // pred_check_branch
      %46 = sbr.rel (0) target = $region17
    $region16: #{tpu_custom_call.1} parent=1 // pred_region
      %47 = dma.done [#allocation6], 256
    $region17: #{tpu_custom_call.1} parent=1 // pred_fallthru
      _
    %s48 = sadd.s32 0, 0
    %s49 = smul.u32 2, %s48
    %s50 = sadd.s32 0, 0
    %s51 = smul.u32 2, %s50
    %p52 = scmp.eq.s32.totalorder 0, 0
    // Predicated region
    $region18: #{tpu_custom_call.1} parent=1 // pred_check
      %p53 = pneg %p52
    $region19: #{tpu_custom_call.1} parent=1 // pred_check_branch
      %55 = sbr.rel (%p53) target = $region21
    $region20: #{tpu_custom_call.1} parent=1 // pred_region
      %56 = vst [vmem:[#allocation7] sm:$0xff] 0.0
    $region21: #{tpu_custom_call.1} parent=1 // pred_fallthru
      _
    %v57 = vld [vmem:[#allocation2] sm:$0xff]
    %v58 = vld [vmem:[#allocation2 + $0x8] sm:$0xff]
    %v59 = vld [vmem:[#allocation5] sm:$0xff]
    %v60 = vld [vmem:[#allocation5 + $0x8] sm:$0xff]
    %v61 = vsub.f32 %v57, %v59
    %v62 = vsub.f32 %v58, %v60
    %v63 = vmul.f32 %v61, %v61
    %v64 = vmul.f32 %v62, %v62
    %v65 = vld [vmem:[#allocation7] sm:$0xff]
    %v66 = vadd.f32 %v63, %v64
    %v67 = vadd.f32 %v65, %v66
    %68 = vst [vmem:[#allocation7] sm:$0xff] %v67
    // Predicated region
    $region22: #{tpu_custom_call.1} parent=1 // pred_check
      _
    $region23: #{tpu_custom_call.1} parent=1 // pred_check_branch
      %70 = sbr.rel (0) target = $region25
    $region24: #{tpu_custom_call.1} parent=1 // pred_region
      %s72 = ssub.s32 128, 128
      %73 = vsyncadd [#allocation4], %s72
      %s75 = sshll.u32 [#allocation7], 4
      %s76 = int_to_ptr.vmem [resolvable:$true] %s75
      %78 = dma.vmem_to_hbm [thread:$0]  %s76, 128, %s2, [#allocation4]
    $region25: #{tpu_custom_call.1} parent=1 // pred_fallthru
      _
    // Predicated region
    $region26: #{tpu_custom_call.1} parent=1 // pred_check
      _
    $region27: #{tpu_custom_call.1} parent=1 // pred_check_branch
      %80 = sbr.rel (0) target = $region29
    $region28: #{tpu_custom_call.1} parent=1 // pred_region
      %81 = dma.done [#allocation4], 128
    $region29: #{tpu_custom_call.1} parent=1 // pred_fallthru
      _
    %82 = vsyncpa [#allocation3], 1
    %83 = vsyncpa [#allocation6], 1
    %84 = vsyncpa [#allocation4], 1

</llo_original>
